<compile_context>
chip_gen: v7x
topology: tpu7x:2x2x1
jax: 0.10.0
libtpu: 0.0.40
codegen_flags: <defaults>
</compile_context>

<pallas_src>
import functools

import jax
import jax.numpy as jnp
from jax.experimental import pallas as pl
from jax.experimental.pallas import tpu as pltpu


# ------------------------------------------------------------------------------
# kernel body (operates on one (B, Hp) session group resident in VMEM)
# ------------------------------------------------------------------------------
def find_neighbors_kernel(x_ref, o_ref, *, k, h_true):
    x = x_ref[...]                                              # (B, Hp) float32
    b = x.shape[0]

    # --- compute_sim: cosine similarity + row softmax -------------------------
    # torch: fenzi = x @ x.T ; fenmu = outer(sqrt(sum(x*x + 1e-6, 1))).
    # Equivalent: normalize rows by their biased norm, then one NT matmul.
    # (1e-6 is per *true* element, so padded lanes don't change the norm.)
    sq = jnp.sum(x * x, axis=1, keepdims=True) + jnp.float32(h_true * 1e-6)
    xn = x * jax.lax.rsqrt(sq)                                  # (B, Hp)
    cos = pl.dot(xn, xn, trans_b=True)                          # (B, B) f32, MXU NT

    m = jnp.max(cos, axis=-1, keepdims=True)
    cos = jnp.exp(cos - m)
    cos = cos / jnp.sum(cos, axis=-1, keepdims=True)            # row softmax

    # --- top-k extraction with the second softmax fused in --------------------
    # k unrolled max-extractions (first-index tie-break).  Because extraction
    # is in descending order, the max over the selected values is row_max_0,
    # so the softmax weight of the t-th pick is exp(row_max_t - row_max_0)
    # (normalized at the end).  Exactly k columns per row get nonzero weight,
    # matching torch.topk + softmax on distinct values.
    col = jax.lax.broadcasted_iota(jnp.int32, (b, b), 1)        # int32 lanes
    remaining = cos
    w = jnp.zeros((b, b), dtype=jnp.float32)
    row_max0 = None
    for t in range(k):
        row_max = jnp.max(remaining, axis=-1, keepdims=True)    # (B, 1)
        if t == 0:
            row_max0 = row_max
        is_max = remaining == row_max
        first = jnp.min(jnp.where(is_max, col, jnp.int32(b)),
                        axis=-1, keepdims=True)                 # first max column
        sel = col == first                                      # exactly one/row
        w = w + jnp.where(sel, jnp.exp(row_max - row_max0), 0.0)
        if t + 1 < k:
            remaining = jnp.where(sel, -jnp.inf, remaining)

    # exact division (approx reciprocal would eat into the 1e-4 test tolerance)
    alpha = w / jnp.sum(w, axis=-1, keepdims=True)              # (B, B), k nnz/row

    # --- neighbor aggregation: sum_j alpha[i,j] * sess_emb[j] ------------------
    o_ref[...] = jnp.dot(alpha, x, preferred_element_type=jnp.float32)
    # TODO(synk): nn.Dropout(0.4) is identity in eval mode; training-mode
    # dropout would need pltpu.prng_seed / prng_random_bits masking here.


# ------------------------------------------------------------------------------
# wrappers
# ------------------------------------------------------------------------------
def _pad_to_lane_multiple(x, multiple=128):
    """Zero-pad the last (lane) dim up to a multiple of `multiple`."""
    pad = (-x.shape[-1]) % multiple
    if pad == 0:
        return x
    widths = [(0, 0)] * (x.ndim - 1) + [(0, pad)]
    return jnp.pad(x, widths)


def _vmem_limit_bytes(b, hp):
    """Raise the scoped-VMEM limit only when the working set needs it."""
    # ~4 live (B,B) f32 temporaries + input/output (B,Hp) (double-buffered I/O),
    # with 2x headroom.
    need = 2 * (4 * b * b + 4 * b * hp) * 4
    if need <= (32 << 20):
        return None                    # default scoped limit is enough
    return int(min(need, 64 << 20))    # cap at v7x physical VMEM per core


def find_neighbors(sess_emb, *, nei_n, lane_pad=True):
    """One (B, H) session group.  No grid: whole arrays live in VMEM."""
    b, h = sess_emb.shape
    k = min(nei_n, b)                  # torch: if cos_sim.size(0) < k_v: k_v = size(0)
    x = sess_emb.astype(jnp.float32)
    if lane_pad:
        x = _pad_to_lane_multiple(x)   # lane-dense loads + unmasked output stores
    hp = x.shape[-1]
    out = pl.pallas_call(
        functools.partial(find_neighbors_kernel, k=k, h_true=h),
        out_shape=jax.ShapeDtypeStruct((b, hp), jnp.float32),
        in_specs=[pl.BlockSpec(memory_space=pltpu.MemorySpace.VMEM)],
        out_specs=pl.BlockSpec(memory_space=pltpu.MemorySpace.VMEM),
        compiler_params=pltpu.CompilerParams(
            vmem_limit_bytes=_vmem_limit_bytes(b, hp)),
    )(x)
    return out[:, :h] if hp != h else out


def find_neighbors_batched(sess_groups, *, nei_n, lane_pad=True):
    """Many independent (B, H) session groups in one call, parallel grid axis."""
    g, b, h = sess_groups.shape
    k = min(nei_n, b)
    x = sess_groups.astype(jnp.float32)
    if lane_pad:
        x = _pad_to_lane_multiple(x)
    hp = x.shape[-1]
    out = pl.pallas_call(
        functools.partial(find_neighbors_kernel, k=k, h_true=h),
        out_shape=jax.ShapeDtypeStruct((g, b, hp), jnp.float32),
        grid=(g,),
        in_specs=[pl.BlockSpec((None, b, hp), lambda i: (i, 0, 0))],
        out_specs=pl.BlockSpec((None, b, hp), lambda i: (i, 0, 0)),
        compiler_params=pltpu.CompilerParams(
            dimension_semantics=("parallel",),
            vmem_limit_bytes=_vmem_limit_bytes(b, hp)),
    )(x)
    return out[..., :h] if hp != h else out


# ------------------------------------------------------------------------------
# pure-JAX reference (mirrors the PyTorch module op-for-op) for validation
# ------------------------------------------------------------------------------
def find_neighbors_ref(x, nei_n):
    b, h = x.shape
    k = min(nei_n, b)
    fenzi = x @ x.T
    fenmu_l = jnp.sqrt(jnp.sum(x * x + 1e-6, axis=1))[:, None]
    fenmu = fenmu_l @ fenmu_l.T
    cos = jax.nn.softmax(fenzi / fenmu, axis=-1)
    vals, idx = jax.lax.top_k(cos, k)
    w = jax.nn.softmax(vals, axis=-1)
    gathered = x[idx]                                           # (B, k, H)
    return jnp.sum(w[..., None] * gathered, axis=1)             # (B, H)


if __name__ == "__main__":
    BATCH, HIDDEN, NEI_N, GROUPS = 16, 32, 5, 4

    key = jax.random.PRNGKey(0)
    k1, k2 = jax.random.split(key)
    sess_emb = jax.random.normal(k1, (BATCH, HIDDEN), dtype=jnp.float32)
    sess_groups = jax.random.normal(k2, (GROUPS, BATCH, HIDDEN), dtype=jnp.float32)

    # single-group path (no grid, VMEM-resident, lane-dense)
    fwd = jax.jit(functools.partial(find_neighbors, nei_n=NEI_N))
    out = fwd(sess_emb)
    jax.block_until_ready(out)
    ref = find_neighbors_ref(sess_emb, NEI_N)
    assert out.shape == (BATCH, HIDDEN)
    assert jnp.allclose(out, ref, atol=1e-4, rtol=1e-4), \
        float(jnp.max(jnp.abs(out - ref)))

    # batched path (parallel grid over groups)
    fwd_b = jax.jit(functools.partial(find_neighbors_batched, nei_n=NEI_N))
    out_b = fwd_b(sess_groups)
    jax.block_until_ready(out_b)
    ref_b = jax.vmap(lambda g: find_neighbors_ref(g, NEI_N))(sess_groups)
    assert out_b.shape == (GROUPS, BATCH, HIDDEN)
    assert jnp.allclose(out_b, ref_b, atol=1e-4, rtol=1e-4), \
        float(jnp.max(jnp.abs(out_b - ref_b)))

    print("KERNEL_OK")
</pallas_src>

<mosaic_0001>
module attributes {stable_mosaic.version = 11 : i64} {
  func.func @find_neighbors_kernel(%arg0: memref<16x128xf32, #tpu.memory_space<vmem>>, %arg1: memref<16x128xf32, #tpu.memory_space<vmem>>) attributes {dimension_semantics = [], scalar_prefetch = 0 : i64, scratch_operands = 0 : i64, tpu.core_type = #tpu.core_type<tc>} {
    %c0 = arith.constant 0 : index
    %c0_0 = arith.constant 0 : index
    %0 = vector.load %arg0[%c0, %c0_0] : memref<16x128xf32, #tpu.memory_space<vmem>>, vector<16x128xf32>
    %1 = arith.mulf %0, %0 : vector<16x128xf32>
    %cst = arith.constant dense<0.000000e+00> : vector<16xf32>
    %2 = vector.multi_reduction <add>, %1, %cst [1] : vector<16x128xf32> to vector<16xf32>
    %3 = vector.shape_cast %2 : vector<16xf32> to vector<16x1xf32>
    %cst_1 = arith.constant 3.200000e-05 : f32
    %4 = vector.broadcast %cst_1 : f32 to vector<16x1xf32>
    %5 = arith.addf %3, %4 : vector<16x1xf32>
    %6 = math.rsqrt %5 : vector<16x1xf32>
    %7 = vector.broadcast %6 : vector<16x1xf32> to vector<16x128xf32>
    %8 = arith.mulf %0, %7 : vector<16x128xf32>
    %cst_2 = arith.constant dense<0.000000e+00> : vector<16x16xf32>
    %9 = tpu.matmul %8, %8, %cst_2 {dimension_numbers = #tpu.dot_dimension_numbers<[1], [1], [0], [0], [0, 0, 1, 0], [], []>} : vector<16x128xf32>, vector<16x128xf32>, vector<16x16xf32> -> vector<16x16xf32>
    %cst_3 = arith.constant dense<0xFF800000> : vector<16xf32>
    %10 = vector.multi_reduction <maximumf>, %9, %cst_3 [1] : vector<16x16xf32> to vector<16xf32>
    %11 = vector.shape_cast %10 : vector<16xf32> to vector<16x1xf32>
    %12 = vector.broadcast %11 : vector<16x1xf32> to vector<16x16xf32>
    %13 = arith.subf %9, %12 : vector<16x16xf32>
    %14 = math.exp %13 : vector<16x16xf32>
    %cst_4 = arith.constant dense<0.000000e+00> : vector<16xf32>
    %15 = vector.multi_reduction <add>, %14, %cst_4 [1] : vector<16x16xf32> to vector<16xf32>
    %16 = vector.shape_cast %15 : vector<16xf32> to vector<16x1xf32>
    %17 = vector.broadcast %16 : vector<16x1xf32> to vector<16x16xf32>
    %18 = arith.divf %14, %17 : vector<16x16xf32>
    %19 = tpu.iota {dimensions = array<i32: 1>} : vector<16x16xi32>
    %cst_5 = arith.constant 0.000000e+00 : f32
    %20 = vector.broadcast %cst_5 : f32 to vector<16x16xf32>
    %cst_6 = arith.constant dense<0xFF800000> : vector<16xf32>
    %21 = vector.multi_reduction <maximumf>, %18, %cst_6 [1] : vector<16x16xf32> to vector<16xf32>
    %22 = vector.shape_cast %21 : vector<16xf32> to vector<16x1xf32>
    %23 = vector.broadcast %22 : vector<16x1xf32> to vector<16x16xf32>
    %24 = arith.cmpf oeq, %18, %23 : vector<16x16xf32>
    %c16_i32 = arith.constant 16 : i32
    %25 = vector.broadcast %c16_i32 : i32 to vector<16x16xi32>
    %26 = arith.select %24, %19, %25 : vector<16x16xi1>, vector<16x16xi32>
    %cst_7 = arith.constant dense<2147483647> : vector<16xi32>
    %27 = vector.multi_reduction <minsi>, %26, %cst_7 [1] : vector<16x16xi32> to vector<16xi32>
    %28 = vector.shape_cast %27 : vector<16xi32> to vector<16x1xi32>
    %29 = vector.broadcast %28 : vector<16x1xi32> to vector<16x16xi32>
    %30 = arith.cmpi eq, %19, %29 : vector<16x16xi32>
    %31 = arith.subf %22, %22 : vector<16x1xf32>
    %32 = math.exp %31 : vector<16x1xf32>
    %cst_8 = arith.constant 0.000000e+00 : f32
    %33 = vector.shape_cast %32 : vector<16x1xf32> to vector<16x1xf32>
    %34 = vector.broadcast %33 : vector<16x1xf32> to vector<16x16xf32>
    %35 = vector.broadcast %cst_8 : f32 to vector<16x16xf32>
    %36 = arith.select %30, %34, %35 : vector<16x16xi1>, vector<16x16xf32>
    %37 = arith.addf %20, %36 : vector<16x16xf32>
    %cst_9 = arith.constant 0xFF800000 : f32
    %38 = vector.broadcast %cst_9 : f32 to vector<16x16xf32>
    %39 = arith.select %30, %38, %18 : vector<16x16xi1>, vector<16x16xf32>
    %cst_10 = arith.constant dense<0xFF800000> : vector<16xf32>
    %40 = vector.multi_reduction <maximumf>, %39, %cst_10 [1] : vector<16x16xf32> to vector<16xf32>
    %41 = vector.shape_cast %40 : vector<16xf32> to vector<16x1xf32>
    %42 = vector.broadcast %41 : vector<16x1xf32> to vector<16x16xf32>
    %43 = arith.cmpf oeq, %39, %42 : vector<16x16xf32>
    %c16_i32_11 = arith.constant 16 : i32
    %44 = vector.broadcast %c16_i32_11 : i32 to vector<16x16xi32>
    %45 = arith.select %43, %19, %44 : vector<16x16xi1>, vector<16x16xi32>
    %cst_12 = arith.constant dense<2147483647> : vector<16xi32>
    %46 = vector.multi_reduction <minsi>, %45, %cst_12 [1] : vector<16x16xi32> to vector<16xi32>
    %47 = vector.shape_cast %46 : vector<16xi32> to vector<16x1xi32>
    %48 = vector.broadcast %47 : vector<16x1xi32> to vector<16x16xi32>
    %49 = arith.cmpi eq, %19, %48 : vector<16x16xi32>
    %50 = arith.subf %41, %22 : vector<16x1xf32>
    %51 = math.exp %50 : vector<16x1xf32>
    %cst_13 = arith.constant 0.000000e+00 : f32
    %52 = vector.shape_cast %51 : vector<16x1xf32> to vector<16x1xf32>
    %53 = vector.broadcast %52 : vector<16x1xf32> to vector<16x16xf32>
    %54 = vector.broadcast %cst_13 : f32 to vector<16x16xf32>
    %55 = arith.select %49, %53, %54 : vector<16x16xi1>, vector<16x16xf32>
    %56 = arith.addf %37, %55 : vector<16x16xf32>
    %cst_14 = arith.constant 0xFF800000 : f32
    %57 = vector.broadcast %cst_14 : f32 to vector<16x16xf32>
    %58 = arith.select %49, %57, %39 : vector<16x16xi1>, vector<16x16xf32>
    %cst_15 = arith.constant dense<0xFF800000> : vector<16xf32>
    %59 = vector.multi_reduction <maximumf>, %58, %cst_15 [1] : vector<16x16xf32> to vector<16xf32>
    %60 = vector.shape_cast %59 : vector<16xf32> to vector<16x1xf32>
    %61 = vector.broadcast %60 : vector<16x1xf32> to vector<16x16xf32>
    %62 = arith.cmpf oeq, %58, %61 : vector<16x16xf32>
    %c16_i32_16 = arith.constant 16 : i32
    %63 = vector.broadcast %c16_i32_16 : i32 to vector<16x16xi32>
    %64 = arith.select %62, %19, %63 : vector<16x16xi1>, vector<16x16xi32>
    %cst_17 = arith.constant dense<2147483647> : vector<16xi32>
    %65 = vector.multi_reduction <minsi>, %64, %cst_17 [1] : vector<16x16xi32> to vector<16xi32>
    %66 = vector.shape_cast %65 : vector<16xi32> to vector<16x1xi32>
    %67 = vector.broadcast %66 : vector<16x1xi32> to vector<16x16xi32>
    %68 = arith.cmpi eq, %19, %67 : vector<16x16xi32>
    %69 = arith.subf %60, %22 : vector<16x1xf32>
    %70 = math.exp %69 : vector<16x1xf32>
    %cst_18 = arith.constant 0.000000e+00 : f32
    %71 = vector.shape_cast %70 : vector<16x1xf32> to vector<16x1xf32>
    %72 = vector.broadcast %71 : vector<16x1xf32> to vector<16x16xf32>
    %73 = vector.broadcast %cst_18 : f32 to vector<16x16xf32>
    %74 = arith.select %68, %72, %73 : vector<16x16xi1>, vector<16x16xf32>
    %75 = arith.addf %56, %74 : vector<16x16xf32>
    %cst_19 = arith.constant 0xFF800000 : f32
    %76 = vector.broadcast %cst_19 : f32 to vector<16x16xf32>
    %77 = arith.select %68, %76, %58 : vector<16x16xi1>, vector<16x16xf32>
    %cst_20 = arith.constant dense<0xFF800000> : vector<16xf32>
    %78 = vector.multi_reduction <maximumf>, %77, %cst_20 [1] : vector<16x16xf32> to vector<16xf32>
    %79 = vector.shape_cast %78 : vector<16xf32> to vector<16x1xf32>
    %80 = vector.broadcast %79 : vector<16x1xf32> to vector<16x16xf32>
    %81 = arith.cmpf oeq, %77, %80 : vector<16x16xf32>
    %c16_i32_21 = arith.constant 16 : i32
    %82 = vector.broadcast %c16_i32_21 : i32 to vector<16x16xi32>
    %83 = arith.select %81, %19, %82 : vector<16x16xi1>, vector<16x16xi32>
    %cst_22 = arith.constant dense<2147483647> : vector<16xi32>
    %84 = vector.multi_reduction <minsi>, %83, %cst_22 [1] : vector<16x16xi32> to vector<16xi32>
    %85 = vector.shape_cast %84 : vector<16xi32> to vector<16x1xi32>
    %86 = vector.broadcast %85 : vector<16x1xi32> to vector<16x16xi32>
    %87 = arith.cmpi eq, %19, %86 : vector<16x16xi32>
    %88 = arith.subf %79, %22 : vector<16x1xf32>
    %89 = math.exp %88 : vector<16x1xf32>
    %cst_23 = arith.constant 0.000000e+00 : f32
    %90 = vector.shape_cast %89 : vector<16x1xf32> to vector<16x1xf32>
    %91 = vector.broadcast %90 : vector<16x1xf32> to vector<16x16xf32>
    %92 = vector.broadcast %cst_23 : f32 to vector<16x16xf32>
    %93 = arith.select %87, %91, %92 : vector<16x16xi1>, vector<16x16xf32>
    %94 = arith.addf %75, %93 : vector<16x16xf32>
    %cst_24 = arith.constant 0xFF800000 : f32
    %95 = vector.broadcast %cst_24 : f32 to vector<16x16xf32>
    %96 = arith.select %87, %95, %77 : vector<16x16xi1>, vector<16x16xf32>
    %cst_25 = arith.constant dense<0xFF800000> : vector<16xf32>
    %97 = vector.multi_reduction <maximumf>, %96, %cst_25 [1] : vector<16x16xf32> to vector<16xf32>
    %98 = vector.shape_cast %97 : vector<16xf32> to vector<16x1xf32>
    %99 = vector.broadcast %98 : vector<16x1xf32> to vector<16x16xf32>
    %100 = arith.cmpf oeq, %96, %99 : vector<16x16xf32>
    %c16_i32_26 = arith.constant 16 : i32
    %101 = vector.broadcast %c16_i32_26 : i32 to vector<16x16xi32>
    %102 = arith.select %100, %19, %101 : vector<16x16xi1>, vector<16x16xi32>
    %cst_27 = arith.constant dense<2147483647> : vector<16xi32>
    %103 = vector.multi_reduction <minsi>, %102, %cst_27 [1] : vector<16x16xi32> to vector<16xi32>
    %104 = vector.shape_cast %103 : vector<16xi32> to vector<16x1xi32>
    %105 = vector.broadcast %104 : vector<16x1xi32> to vector<16x16xi32>
    %106 = arith.cmpi eq, %19, %105 : vector<16x16xi32>
    %107 = arith.subf %98, %22 : vector<16x1xf32>
    %108 = math.exp %107 : vector<16x1xf32>
    %cst_28 = arith.constant 0.000000e+00 : f32
    %109 = vector.shape_cast %108 : vector<16x1xf32> to vector<16x1xf32>
    %110 = vector.broadcast %109 : vector<16x1xf32> to vector<16x16xf32>
    %111 = vector.broadcast %cst_28 : f32 to vector<16x16xf32>
    %112 = arith.select %106, %110, %111 : vector<16x16xi1>, vector<16x16xf32>
    %113 = arith.addf %94, %112 : vector<16x16xf32>
    %cst_29 = arith.constant dense<0.000000e+00> : vector<16xf32>
    %114 = vector.multi_reduction <add>, %113, %cst_29 [1] : vector<16x16xf32> to vector<16xf32>
    %115 = vector.shape_cast %114 : vector<16xf32> to vector<16x1xf32>
    %116 = vector.broadcast %115 : vector<16x1xf32> to vector<16x16xf32>
    %117 = arith.divf %113, %116 : vector<16x16xf32>
    %cst_30 = arith.constant dense<0.000000e+00> : vector<16x128xf32>
    %118 = tpu.matmul %117, %0, %cst_30 {dimension_numbers = #tpu.dot_dimension_numbers<[1], [0], [0], [1], [0, 0, 1, 1], [], []>} : vector<16x16xf32>, vector<16x128xf32>, vector<16x128xf32> -> vector<16x128xf32>
    %c0_31 = arith.constant 0 : index
    %c0_32 = arith.constant 0 : index
    %119 = vector.load %arg1[%c0_31, %c0_32] : memref<16x128xf32, #tpu.memory_space<vmem>>, vector<16x128xf32>
    tpu.vector_store %arg1[%c0_31, %c0_32], %118 {strides = array<i32>} : memref<16x128xf32, #tpu.memory_space<vmem>>, vector<16x128xf32>,
    return
  }
}

</mosaic_0001>

<llo_original>
// kernel: find_neighbors.1
$region0: #{find_neighbors.1}
  #allocation0 [shape = 'u32[]', space=smem, size = 0x4, offset = 0x4, fixed_abs, tag = 'smem constant byte address 0x4 - core index']
  #allocation1 [shape = 'u32[144,128]{1,0:T(1,128)}', space=vmem, size = 0x12000, scoped, tag = 'internal scratch']
  %s0 = inlined_call_operand.vmem [shape: f32[16,128], index: 0, kind: input, shape index: {}]
  %s1 = inlined_call_operand.hbm [shape: f32[16,128], index: 1, kind: output, shape index: {}]
  %s2 = sld [smem:[#allocation0]]
  $region14: #{find_neighbors.1} parent=0
    _
  %s4 = ssub.s32 1, %s2
  %s5 = scalar_select 0, %s4, %s2
  $region1: #{find_neighbors.1} parent=0
    #allocation2 [shape = 'u8[8192]{0}', space=vmem, size = 0x2000, scoped, tag = 'output window, operand 0, single buffered']
    #allocation3 [shape = 's32[1]{0}', space=sflag, size = 0x4, scoped, tag = 'scoped memory for find_neighbors.1']
    %6 = vsyncpa [#allocation3], 0
    // Predicated region
    $region2: #{find_neighbors.1} parent=1 // pred_check
      _
    $region3: #{find_neighbors.1} parent=1 // pred_check_branch
      %8 = sbr.rel (0) target = $region5
    $region4: #{find_neighbors.1} parent=1 // pred_region
      _
    $region5: #{find_neighbors.1} parent=1 // pred_fallthru
      _
    %v9 = vld [vmem:[%s0] sm:$0xff]
    %v10 = vld [vmem:[%s0 + $0x8] sm:$0xff]
    %v11 = vmul.f32 %v9, %v9
    %v12 = vmul.f32 %v10, %v10
    %13 = vadd.xlane.f32.xlu0 %v11
    %v14 = vpop.xlane.xlu0 %13
    %15 = vadd.xlane.f32.xlu0 %v12
    %v16 = vpop.xlane.xlu0 %15
    %v17 = vadd.f32 %v14, 3.2e-05
    %v18 = vadd.f32 %v16, 3.2e-05
    %v19 = vrsqrt.pop %v17
    %v20 = vrsqrt.pop %v18
    %v21 = vmul.f32 %v9, %v19
    %v22 = vmul.f32 %v10, %v20
    %23 = vmatprep.subr.mxu0 0.0
    %24 = vmatpush1.xpose.msra.mxu0 %v21
    %25 = vmatprep.subr.mxu0 0.0
    %26 = vmatpush1.xpose.msra.mxu0 %v22
    %27 = vmatprep.subr.mxu0 0.0
    %28 = vmatpush1.xpose.msra.mxu0 0.0
    %29 = vmatprep.subr.mxu0 0.0
    %30 = vmatpush1.xpose.msra.mxu0 0.0
    %31 = vmatprep.subr.mxu0 0.0
    %32 = vmatpush1.xpose.msra.mxu0 0.0
    %33 = vmatprep.subr.mxu0 0.0
    %34 = vmatpush1.xpose.msra.mxu0 0.0
    %35 = vmatprep.subr.mxu0 0.0
    %36 = vmatpush1.xpose.msra.mxu0 0.0
    %37 = vmatprep.subr.mxu0 0.0
    %38 = vmatpush1.xpose.msra.mxu0 0.0
    %39 = vmatprep.subr.mxu0 0.0
    %40 = vmatpush1.xpose.msra.mxu0 0.0
    %41 = vmatprep.subr.mxu0 0.0
    %42 = vmatpush1.xpose.msra.mxu0 0.0
    %43 = vmatprep.subr.mxu0 0.0
    %44 = vmatpush1.xpose.msra.mxu0 0.0
    %45 = vmatprep.subr.mxu0 0.0
    %46 = vmatpush1.xpose.msra.mxu0 0.0
    %47 = vmatprep.subr.mxu0 0.0
    %48 = vmatpush1.xpose.msra.mxu0 0.0
    %49 = vmatprep.subr.mxu0 0.0
    %50 = vmatpush1.xpose.msra.mxu0 0.0
    %51 = vmatprep.subr.mxu0 0.0
    %52 = vmatpush1.xpose.msra.mxu0 0.0
    %53 = vmatprep.subr.mxu0 0.0
    %54 = vmatpush1.xpose.msra.mxu0 0.0
    %55 = vmatprep.subr.mxu0 0.0
    %56 = vmatpush1.xpose.msra.mxu0 0.0
    %57 = vmatprep.subr.mxu0 0.0
    %58 = vmatpush1.xpose.msra.mxu0 0.0
    %59 = vmatprep.subr.mxu0 0.0
    %60 = vmatpush1.xpose.msra.mxu0 0.0
    %61 = vmatprep.subr.mxu0 0.0
    %62 = vmatpush1.xpose.msra.mxu0 0.0
    %63 = vmatprep.subr.mxu0 0.0
    %64 = vmatpush1.xpose.msra.mxu0 0.0
    %65 = vmatprep.subr.mxu0 0.0
    %66 = vmatpush1.xpose.msra.mxu0 0.0
    %67 = vmatprep.subr.mxu0 0.0
    %68 = vmatpush1.xpose.msra.mxu0 0.0
    %69 = vmatprep.subr.mxu0 0.0
    %70 = vmatpush1.xpose.msra.mxu0 0.0
    %71 = vmatprep.subr.mxu0 0.0
    %72 = vmatpush1.xpose.msra.mxu0 0.0
    %73 = vmatprep.subr.mxu0 0.0
    %74 = vmatpush1.xpose.msra.mxu0 0.0
    %75 = vmatprep.subr.mxu0 0.0
    %76 = vmatpush1.xpose.msra.mxu0 0.0
    %77 = vmatprep.subr.mxu0 0.0
    %78 = vmatpush1.xpose.msra.mxu0 0.0
    %79 = vmatprep.subr.mxu0 0.0
    %80 = vmatpush1.xpose.msra.mxu0 0.0
    %81 = vmatprep.subr.mxu0 0.0
    %82 = vmatpush1.xpose.msra.mxu0 0.0
    %83 = vmatprep.subr.mxu0 0.0
    %84 = vmatpush1.xpose.msra.mxu0 0.0
    %85 = vmatprep.subr.mxu0 0.0
    %86 = vmatpush1.xpose.msra.mxu0 0.0
    %87 = vmatprep.mubr.f32.mxu0 0.0
    %88 = vmatmul.mubr.f32.gmra.mrb[0].mxu0 %v21
    %v89 = vpop.f32.mrb[0].mxu0
    %v90 = vadd.f32 0.0, %v89
    %v91 = vpop.f32.mrb[0].mxu0
    %92 = vmatprep.mubr.f32.mxu0 0.0
    %93 = vmatmul.mubr.f32.gmra.mrb[0].mxu0 %v22
    %v94 = vpop.f32.mrb[0].mxu0
    %v95 = vadd.f32 0.0, %v94
    %v96 = vpop.f32.mrb[0].mxu0
    %97 = vdwg.mxu0
    %vm98 = vcmask 130048
    %v99 = vsel %vm98, %v90, -inf
    %100 = vmax.xlane.f32.xlu0 %v99
    %v101 = vpop.xlane.xlu0 %100
    %v102 = vsel %vm98, %v95, -inf
    %103 = vmax.xlane.f32.xlu0 %v102
    %v104 = vpop.xlane.xlu0 %103
    %v105 = vsub.f32 %v90, %v101
    %v106 = vsub.f32 %v95, %v104
    %v107 = vmul.f32 %v105, 1.442695
    %v108 = vpow.pop %v107
    %v109 = vmul.f32 %v106, 1.442695
    %v110 = vpow.pop %v109
    %v111 = vsel %vm98, %v108, 0.0
    %112 = vadd.xlane.f32.xlu0 %v111
    %v113 = vpop.xlane.xlu0 %112
    %v114 = vsel %vm98, %v110, 0.0
    %115 = vadd.xlane.f32.xlu0 %v114
    %v116 = vpop.xlane.xlu0 %115
    %v117 = vrcp.pop %v113
    %v118 = vmul.f32 %v108, %v117
    %v119 = vrcp.pop %v116
    %v120 = vmul.f32 %v110, %v119
    %v121 = vlaneseq
    %v122 = vand.u32 %v121, 127
    %v123 = vsel %vm98, %v118, -inf
    %124 = vmax.xlane.f32.xlu0 %v123
    %v125 = vpop.xlane.xlu0 %124
    %v126 = vsel %vm98, %v120, -inf
    %127 = vmax.xlane.f32.xlu0 %v126
    %v128 = vpop.xlane.xlu0 %127
    %vm129 = vcmp.eq.f32.partialorder %v118, %v125
    %vm130 = vcmp.eq.f32.partialorder %v120, %v128
    %v131 = vsel %vm129, %v122, 16
    %v132 = vsel %vm130, %v122, 16
    %v133 = vsel %vm98, %v131, 2147483647
    %v134 = vand.u32 %v133, 65535
    %v135 = vshra.s32 %v133, 16
    %v136 = vcvt.s32.f32 %v134
    %v137 = vcvt.s32.f32 %v135
    %138 = vmin.xlane.f32.xlu0 %v137
    %v139 = vpop.xlane.xlu0 %138
    %vm140 = vcmp.eq.f32.partialorder %v137, %v139
    %v141 = vsel %vm140, %v136, inf
    %142 = vmin.xlane.f32.xlu0 %v141
    %v143 = vpop.xlane.xlu0 %142
    %v144 = vcvt.f32.s32 %v143
    %v145 = vcvt.f32.s32 %v139
    %v146 = vshll.u32 %v145, 16
    %v147 = vadd.s32 %v146, %v144
    %v148 = vsel %vm98, %v132, 2147483647
    %v149 = vand.u32 %v148, 65535
    %v150 = vshra.s32 %v148, 16
    %v151 = vcvt.s32.f32 %v149
    %v152 = vcvt.s32.f32 %v150
    %153 = vmin.xlane.f32.xlu0 %v152
    %v154 = vpop.xlane.xlu0 %153
    %vm155 = vcmp.eq.f32.partialorder %v152, %v154
    %v156 = vsel %vm155, %v151, inf
    %157 = vmin.xlane.f32.xlu0 %v156
    %v158 = vpop.xlane.xlu0 %157
    %v159 = vcvt.f32.s32 %v158
    %v160 = vcvt.f32.s32 %v154
    %v161 = vshll.u32 %v160, 16
    %v162 = vadd.s32 %v161, %v159
    %vm163 = vcmp.eq.s32.totalorder %v122, %v147
    %vm164 = vcmp.eq.s32.totalorder %v122, %v162
    %v165 = vsub.f32 %v125, %v125
    %v166 = vsub.f32 %v128, %v128
    %v167 = vmul.f32 %v165, 1.442695
    %v168 = vpow.pop %v167
    %v169 = vmul.f32 %v166, 1.442695
    %v170 = vpow.pop %v169
    %v171 = vsel %vm163, %v168, 0.0
    %v172 = vsel %vm164, %v170, 0.0
    %v173 = vadd.f32 %v171, 0.0
    %v174 = vadd.f32 %v172, 0.0
    %v175 = vsel %vm163, -inf, %v118
    %v176 = vsel %vm164, -inf, %v120
    %v177 = vsel %vm98, %v175, -inf
    %178 = vmax.xlane.f32.xlu0 %v177
    %v179 = vpop.xlane.xlu0 %178
    %v180 = vsel %vm98, %v176, -inf
    %181 = vmax.xlane.f32.xlu0 %v180
    %v182 = vpop.xlane.xlu0 %181
    %vm183 = vcmp.eq.f32.partialorder %v175, %v179
    %vm184 = vcmp.eq.f32.partialorder %v176, %v182
    %v185 = vsel %vm183, %v122, 16
    %v186 = vsel %vm184, %v122, 16
    %v187 = vsel %vm98, %v185, 2147483647
    %v188 = vand.u32 %v187, 65535
    %v189 = vshra.s32 %v187, 16
    %v190 = vcvt.s32.f32 %v188
    %v191 = vcvt.s32.f32 %v189
    %192 = vmin.xlane.f32.xlu0 %v191
    %v193 = vpop.xlane.xlu0 %192
    %vm194 = vcmp.eq.f32.partialorder %v191, %v193
    %v195 = vsel %vm194, %v190, inf
    %196 = vmin.xlane.f32.xlu0 %v195
    %v197 = vpop.xlane.xlu0 %196
    %v198 = vcvt.f32.s32 %v197
    %v199 = vcvt.f32.s32 %v193
    %v200 = vshll.u32 %v199, 16
    %v201 = vadd.s32 %v200, %v198
    %v202 = vsel %vm98, %v186, 2147483647
    %v203 = vand.u32 %v202, 65535
    %v204 = vshra.s32 %v202, 16
    %v205 = vcvt.s32.f32 %v203
    %v206 = vcvt.s32.f32 %v204
    %207 = vmin.xlane.f32.xlu0 %v206
    %v208 = vpop.xlane.xlu0 %207
    %vm209 = vcmp.eq.f32.partialorder %v206, %v208
    %v210 = vsel %vm209, %v205, inf
    %211 = vmin.xlane.f32.xlu0 %v210
    %v212 = vpop.xlane.xlu0 %211
    %v213 = vcvt.f32.s32 %v212
    %v214 = vcvt.f32.s32 %v208
    %v215 = vshll.u32 %v214, 16
    %v216 = vadd.s32 %v215, %v213
    %vm217 = vcmp.eq.s32.totalorder %v122, %v201
    %vm218 = vcmp.eq.s32.totalorder %v122, %v216
    %v219 = vsub.f32 %v179, %v125
    %v220 = vsub.f32 %v182, %v128
    %v221 = vmul.f32 %v219, 1.442695
    %v222 = vpow.pop %v221
    %v223 = vmul.f32 %v220, 1.442695
    %v224 = vpow.pop %v223
    %v225 = vsel %vm217, %v222, 0.0
    %v226 = vsel %vm218, %v224, 0.0
    %v227 = vadd.f32 %v173, %v225
    %v228 = vadd.f32 %v174, %v226
    %v229 = vsel %vm217, -inf, %v175
    %v230 = vsel %vm218, -inf, %v176
    %v231 = vsel %vm98, %v229, -inf
    %232 = vmax.xlane.f32.xlu0 %v231
    %v233 = vpop.xlane.xlu0 %232
    %v234 = vsel %vm98, %v230, -inf
    %235 = vmax.xlane.f32.xlu0 %v234
    %v236 = vpop.xlane.xlu0 %235
    %vm237 = vcmp.eq.f32.partialorder %v229, %v233
    %vm238 = vcmp.eq.f32.partialorder %v230, %v236
    %v239 = vsel %vm237, %v122, 16
    %v240 = vsel %vm238, %v122, 16
    %v241 = vsel %vm98, %v239, 2147483647
    %v242 = vand.u32 %v241, 65535
    %v243 = vshra.s32 %v241, 16
    %v244 = vcvt.s32.f32 %v242
    %v245 = vcvt.s32.f32 %v243
    %246 = vmin.xlane.f32.xlu0 %v245
    %v247 = vpop.xlane.xlu0 %246
    %vm248 = vcmp.eq.f32.partialorder %v245, %v247
    %v249 = vsel %vm248, %v244, inf
    %250 = vmin.xlane.f32.xlu0 %v249
    %v251 = vpop.xlane.xlu0 %250
    %v252 = vcvt.f32.s32 %v251
    %v253 = vcvt.f32.s32 %v247
    %v254 = vshll.u32 %v253, 16
    %v255 = vadd.s32 %v254, %v252
    %v256 = vsel %vm98, %v240, 2147483647
    %v257 = vand.u32 %v256, 65535
    %v258 = vshra.s32 %v256, 16
    %v259 = vcvt.s32.f32 %v257
    %v260 = vcvt.s32.f32 %v258
    %261 = vmin.xlane.f32.xlu0 %v260
    %v262 = vpop.xlane.xlu0 %261
    %vm263 = vcmp.eq.f32.partialorder %v260, %v262
    %v264 = vsel %vm263, %v259, inf
    %265 = vmin.xlane.f32.xlu0 %v264
    %v266 = vpop.xlane.xlu0 %265
    %v267 = vcvt.f32.s32 %v266
    %v268 = vcvt.f32.s32 %v262
    %v269 = vshll.u32 %v268, 16
    %v270 = vadd.s32 %v269, %v267
    %vm271 = vcmp.eq.s32.totalorder %v122, %v255
    %vm272 = vcmp.eq.s32.totalorder %v122, %v270
    %v273 = vsub.f32 %v233, %v125
    %v274 = vsub.f32 %v236, %v128
    %v275 = vmul.f32 %v273, 1.442695
    %v276 = vpow.pop %v275
    %v277 = vmul.f32 %v274, 1.442695
    %v278 = vpow.pop %v277
    %v279 = vsel %vm271, %v276, 0.0
    %v280 = vsel %vm272, %v278, 0.0
    %v281 = vadd.f32 %v227, %v279
    %v282 = vadd.f32 %v228, %v280
    %v283 = vsel %vm271, -inf, %v229
    %v284 = vsel %vm272, -inf, %v230
    %v285 = vsel %vm98, %v283, -inf
    %286 = vmax.xlane.f32.xlu0 %v285
    %v287 = vpop.xlane.xlu0 %286
    %v288 = vsel %vm98, %v284, -inf
    %289 = vmax.xlane.f32.xlu0 %v288
    %v290 = vpop.xlane.xlu0 %289
    %vm291 = vcmp.eq.f32.partialorder %v283, %v287
    %vm292 = vcmp.eq.f32.partialorder %v284, %v290
    %v293 = vsel %vm291, %v122, 16
    %v294 = vsel %vm292, %v122, 16
    %v295 = vsel %vm98, %v293, 2147483647
    %v296 = vand.u32 %v295, 65535
    %v297 = vshra.s32 %v295, 16
    %v298 = vcvt.s32.f32 %v296
    %v299 = vcvt.s32.f32 %v297
    %300 = vmin.xlane.f32.xlu0 %v299
    %v301 = vpop.xlane.xlu0 %300
    %vm302 = vcmp.eq.f32.partialorder %v299, %v301
    %v303 = vsel %vm302, %v298, inf
    %304 = vmin.xlane.f32.xlu0 %v303
    %v305 = vpop.xlane.xlu0 %304
    %v306 = vcvt.f32.s32 %v305
    %v307 = vcvt.f32.s32 %v301
    %v308 = vshll.u32 %v307, 16
    %v309 = vadd.s32 %v308, %v306
    %v310 = vsel %vm98, %v294, 2147483647
    %v311 = vand.u32 %v310, 65535
    %v312 = vshra.s32 %v310, 16
    %v313 = vcvt.s32.f32 %v311
    %v314 = vcvt.s32.f32 %v312
    %315 = vmin.xlane.f32.xlu0 %v314
    %v316 = vpop.xlane.xlu0 %315
    %vm317 = vcmp.eq.f32.partialorder %v314, %v316
    %v318 = vsel %vm317, %v313, inf
    %319 = vmin.xlane.f32.xlu0 %v318
    %v320 = vpop.xlane.xlu0 %319
    %v321 = vcvt.f32.s32 %v320
    %v322 = vcvt.f32.s32 %v316
    %v323 = vshll.u32 %v322, 16
    %v324 = vadd.s32 %v323, %v321
    %vm325 = vcmp.eq.s32.totalorder %v122, %v309
    %vm326 = vcmp.eq.s32.totalorder %v122, %v324
    %v327 = vsub.f32 %v287, %v125
    %v328 = vsub.f32 %v290, %v128
    %v329 = vmul.f32 %v327, 1.442695
    %v330 = vpow.pop %v329
    %v331 = vmul.f32 %v328, 1.442695
    %v332 = vpow.pop %v331
    %v333 = vsel %vm325, %v330, 0.0
    %v334 = vsel %vm326, %v332, 0.0
    %v335 = vadd.f32 %v281, %v333
    %v336 = vadd.f32 %v282, %v334
    %v337 = vsel %vm325, -inf, %v283
    %v338 = vsel %vm326, -inf, %v284
    %v339 = vsel %vm98, %v337, -inf
    %340 = vmax.xlane.f32.xlu0 %v339
    %v341 = vpop.xlane.xlu0 %340
    %v342 = vsel %vm98, %v338, -inf
    %343 = vmax.xlane.f32.xlu0 %v342
    %v344 = vpop.xlane.xlu0 %343
    %vm345 = vcmp.eq.f32.partialorder %v337, %v341
    %vm346 = vcmp.eq.f32.partialorder %v338, %v344
    %v347 = vsel %vm345, %v122, 16
    %v348 = vsel %vm346, %v122, 16
    %v349 = vsel %vm98, %v347, 2147483647
    %v350 = vand.u32 %v349, 65535
    %v351 = vshra.s32 %v349, 16
    %v352 = vcvt.s32.f32 %v350
    %v353 = vcvt.s32.f32 %v351
    %354 = vmin.xlane.f32.xlu0 %v353
    %v355 = vpop.xlane.xlu0 %354
    %vm356 = vcmp.eq.f32.partialorder %v353, %v355
    %v357 = vsel %vm356, %v352, inf
    %358 = vmin.xlane.f32.xlu0 %v357
    %v359 = vpop.xlane.xlu0 %358
    %v360 = vcvt.f32.s32 %v359
    %v361 = vcvt.f32.s32 %v355
    %v362 = vshll.u32 %v361, 16
    %v363 = vadd.s32 %v362, %v360
    %v364 = vsel %vm98, %v348, 2147483647
    %v365 = vand.u32 %v364, 65535
    %v366 = vshra.s32 %v364, 16
    %v367 = vcvt.s32.f32 %v365
    %v368 = vcvt.s32.f32 %v366
    %369 = vmin.xlane.f32.xlu0 %v368
    %v370 = vpop.xlane.xlu0 %369
    %vm371 = vcmp.eq.f32.partialorder %v368, %v370
    %v372 = vsel %vm371, %v367, inf
    %373 = vmin.xlane.f32.xlu0 %v372
    %v374 = vpop.xlane.xlu0 %373
    %v375 = vcvt.f32.s32 %v374
    %v376 = vcvt.f32.s32 %v370
    %v377 = vshll.u32 %v376, 16
    %v378 = vadd.s32 %v377, %v375
    %vm379 = vcmp.eq.s32.totalorder %v122, %v363
    %vm380 = vcmp.eq.s32.totalorder %v122, %v378
    %v381 = vsub.f32 %v341, %v125
    %v382 = vsub.f32 %v344, %v128
    %v383 = vmul.f32 %v381, 1.442695
    %v384 = vpow.pop %v383
    %v385 = vmul.f32 %v382, 1.442695
    %v386 = vpow.pop %v385
    %v387 = vsel %vm379, %v384, 0.0
    %v388 = vsel %vm380, %v386, 0.0
    %v389 = vadd.f32 %v335, %v387
    %v390 = vadd.f32 %v336, %v388
    %v391 = vsel %vm98, %v389, 0.0
    %392 = vadd.xlane.f32.xlu0 %v391
    %v393 = vpop.xlane.xlu0 %392
    %v394 = vsel %vm98, %v390, 0.0
    %395 = vadd.xlane.f32.xlu0 %v394
    %v396 = vpop.xlane.xlu0 %395
    %v397 = vrcp.pop %v393
    %v398 = vmul.f32 %v389, %v397
    %v399 = vrcp.pop %v396
    %v400 = vmul.f32 %v390, %v399
    %v402 = vsel %vm98, %v398, 0
    %v405 = vsel %vm98, %v400, 0
    %407 = vmatprep.subr.mxu0 0.0
    %408 = vmatpush1.msra.mxu0 %v9
    %409 = vmatprep.subr.mxu0 0.0
    %410 = vmatpush1.msra.mxu0 %v10
    %411 = vmatprep.subr.mxu0 0.0
    %412 = vmatpush1.msra.mxu0 0.0
    %413 = vmatprep.subr.mxu0 0.0
    %414 = vmatpush1.msra.mxu0 0.0
    %415 = vmatprep.subr.mxu0 0.0
    %416 = vmatpush1.msra.mxu0 0.0
    %417 = vmatprep.subr.mxu0 0.0
    %418 = vmatpush1.msra.mxu0 0.0
    %419 = vmatprep.subr.mxu0 0.0
    %420 = vmatpush1.msra.mxu0 0.0
    %421 = vmatprep.subr.mxu0 0.0
    %422 = vmatpush1.msra.mxu0 0.0
    %423 = vmatprep.subr.mxu0 0.0
    %424 = vmatpush1.msra.mxu0 0.0
    %425 = vmatprep.subr.mxu0 0.0
    %426 = vmatpush1.msra.mxu0 0.0
    %427 = vmatprep.subr.mxu0 0.0
    %428 = vmatpush1.msra.mxu0 0.0
    %429 = vmatprep.subr.mxu0 0.0
    %430 = vmatpush1.msra.mxu0 0.0
    %431 = vmatprep.subr.mxu0 0.0
    %432 = vmatpush1.msra.mxu0 0.0
    %433 = vmatprep.subr.mxu0 0.0
    %434 = vmatpush1.msra.mxu0 0.0
    %435 = vmatprep.subr.mxu0 0.0
    %436 = vmatpush1.msra.mxu0 0.0
    %437 = vmatprep.subr.mxu0 0.0
    %438 = vmatpush1.msra.mxu0 0.0
    %439 = vmatprep.subr.mxu0 0.0
    %440 = vmatpush1.msra.mxu0 0.0
    %441 = vmatprep.subr.mxu0 0.0
    %442 = vmatpush1.msra.mxu0 0.0
    %443 = vmatprep.subr.mxu0 0.0
    %444 = vmatpush1.msra.mxu0 0.0
    %445 = vmatprep.subr.mxu0 0.0
    %446 = vmatpush1.msra.mxu0 0.0
    %447 = vmatprep.subr.mxu0 0.0
    %448 = vmatpush1.msra.mxu0 0.0
    %449 = vmatprep.subr.mxu0 0.0
    %450 = vmatpush1.msra.mxu0 0.0
    %451 = vmatprep.subr.mxu0 0.0
    %452 = vmatpush1.msra.mxu0 0.0
    %453 = vmatprep.subr.mxu0 0.0
    %454 = vmatpush1.msra.mxu0 0.0
    %455 = vmatprep.subr.mxu0 0.0
    %456 = vmatpush1.msra.mxu0 0.0
    %457 = vmatprep.subr.mxu0 0.0
    %458 = vmatpush1.msra.mxu0 0.0
    %459 = vmatprep.subr.mxu0 0.0
    %460 = vmatpush1.msra.mxu0 0.0
    %461 = vmatprep.subr.mxu0 0.0
    %462 = vmatpush1.msra.mxu0 0.0
    %463 = vmatprep.subr.mxu0 0.0
    %464 = vmatpush1.msra.mxu0 0.0
    %465 = vmatprep.subr.mxu0 0.0
    %466 = vmatpush1.msra.mxu0 0.0
    %467 = vmatprep.subr.mxu0 0.0
    %468 = vmatpush1.msra.mxu0 0.0
    %469 = vmatprep.subr.mxu0 0.0
    %470 = vmatpush1.msra.mxu0 0.0
    %471 = vmatprep.mubr.f32.mxu0 0.0
    %472 = vmatmul.mubr.f32.gmra.mrb[0].mxu0 %v402
    %v473 = vpop.f32.mrb[0].mxu0
    %v474 = vadd.f32 0.0, %v473
    %v475 = vpop.f32.mrb[0].mxu0
    %476 = vmatprep.mubr.f32.mxu0 0.0
    %477 = vmatmul.mubr.f32.gmra.mrb[0].mxu0 %v405
    %v478 = vpop.f32.mrb[0].mxu0
    %v479 = vadd.f32 0.0, %v478
    %v480 = vpop.f32.mrb[0].mxu0
    %481 = vdwg.mxu0
    %482 = vst [vmem:[#allocation2] sm:$0xff] %v474
    %483 = vst [vmem:[#allocation2 + $0x8] sm:$0xff] %v479
    // Predicated region
    $region6: #{find_neighbors.1} parent=1 // pred_check
      _
    $region7: #{find_neighbors.1} parent=1 // pred_check_branch
      %485 = sbr.rel (0) target = $region9
    $region8: #{find_neighbors.1} parent=1 // pred_region
      %s487 = ssub.s32 256, 256
      %488 = vsyncadd [#allocation3], %s487
      %s489 = sshll.u32 [#allocation2], 4
      %s490 = int_to_ptr.vmem [resolvable:$true] %s489
      %495 = dma.vmem_to_hbm [thread:$0]  %s490, 256, %s1, [#allocation3], 128, 128, 8
    $region9: #{find_neighbors.1} parent=1 // pred_fallthru
      _
    // Predicated region
    $region10: #{find_neighbors.1} parent=1 // pred_check
      _
    $region11: #{find_neighbors.1} parent=1 // pred_check_branch
      %497 = sbr.rel (0) target = $region13
    $region12: #{find_neighbors.1} parent=1 // pred_region
      %498 = dma.done [#allocation3], 256
    $region13: #{find_neighbors.1} parent=1 // pred_fallthru
      _
    %499 = vsyncpa [#allocation3], 1

</llo_original>
